<compile_context>
chip_gen: v6e
topology: v6e:2x2x1
jax: 0.10.0
libtpu: 0.0.40
codegen_flags: <defaults>
</compile_context>

<pallas_src>
import jax
import jax.numpy as jnp
from jax.experimental import pallas as pl
from jax.experimental.pallas import tpu as pltpu

EPS = 1e-12

# Per-buffer budget for the hidden-state block. The pipeline double-buffers
# each input, so ~2x this lands in VMEM; 4 MiB per block keeps us well inside
# the scoped limit below on every generation while still being large enough
# to stay near the HBM roofline (>= 0.5-1 MiB per DMA).
_HIDDEN_BLOCK_BUDGET_BYTES = 4 * 1024 * 1024
_VMEM_LIMIT_BYTES = 32 * 1024 * 1024  # safe on v5e/v6e (128 MiB) and v7x (64 MiB)


def _avg_kernel(h_ref, m_ref, o_ref, num_acc, den_acc):
    # h_ref:   (TB, TS, H)  hidden-state tile
    # m_ref:   (TB, TS, 1)  mask tile (lane-broadcastable over H), f32
    # o_ref:   (TB, H)      output tile, resident across the sequence grid axis
    # num_acc: (TB, H) f32, den_acc: (TB, 1) f32  accumulators
    s_idx = pl.program_id(1)

    @pl.when(s_idx == 0)
    def _init():
        num_acc[...] = jnp.zeros_like(num_acc)
        den_acc[...] = jnp.zeros_like(den_acc)

    h = h_ref[...]                      # (TB, TS, H)
    m = m_ref[...]                      # (TB, TS, 1) f32

    # Lane-broadcast multiply (VPU) + sublane reduce (XLU) over the seq tile.
    # h*m promotes to f32, so accumulation is in f32 regardless of input dtype.
    num_acc[...] += jnp.sum(h * m, axis=1)          # (TB, H)
    den_acc[...] += jnp.sum(m, axis=1)              # (TB, 1)

    @pl.when(s_idx == pl.num_programs(1) - 1)
    def _finalize():
        # Exact divide (happens once per output tile, negligible cost; approx
        # reciprocal would lose precision vs the reference semantics).
        o_ref[...] = (num_acc[...] / (den_acc[...] + EPS)).astype(o_ref.dtype)


def _sublane_multiple(itemsize):
    # f32 -> 8 sublanes per vreg tile, bf16 -> 16, int8/fp8 -> 32
    return max(8, 32 // itemsize)


def _pick_batch_tile(B, itemsize):
    sub = _sublane_multiple(itemsize)
    # Output block is (TB, H): a partial batch tile must be a multiple of the
    # sublane tile; otherwise just take the whole batch.
    return sub if (B % sub == 0 and B > sub) else B


def _pick_seq_tile(S, TB, H, itemsize):
    sub = _sublane_multiple(itemsize)
    max_ts = _HIDDEN_BLOCK_BUDGET_BYTES // max(1, TB * H * itemsize)
    if S <= max_ts:
        return S
    ts = (max_ts // sub) * sub
    while ts >= sub:
        if S % ts == 0:
            return ts
        ts -= sub
    return S  # fallback: no sequence tiling (correct, just less pipelined)


def avg_pallas(hidden_states, attention_mask, *, batch_tile=None, seq_tile=None):
    """Masked mean over the sequence axis.

    hidden_states:  (B, S, H)
    attention_mask: (B, S) 0/1 (any numeric/bool dtype)
    returns:        (B, H), dtype of hidden_states
    """
    B, S, H = hidden_states.shape
    assert attention_mask.shape == (B, S)

    # (B, S, 1) keeps the mask lane-broadcastable against (TB, TS, H) inside
    # the kernel; f32 for the accumulation.
    mask3 = attention_mask.astype(jnp.float32).reshape(B, S, 1)

    itemsize = jnp.dtype(hidden_states.dtype).itemsize
    TB = batch_tile if batch_tile is not None else _pick_batch_tile(B, itemsize)
    TS = seq_tile if seq_tile is not None else _pick_seq_tile(S, TB, H, itemsize)
    assert B % TB == 0 and S % TS == 0, (B, TB, S, TS)

    grid = (B // TB, S // TS)  # reduction (sequence) axis last

    cost = pl.CostEstimate(
        flops=2 * B * S * H,
        transcendentals=0,
        bytes_accessed=itemsize * B * S * H + 4 * B * S + itemsize * B * H,
    )

    return pl.pallas_call(
        _avg_kernel,
        out_shape=jax.ShapeDtypeStruct((B, H), hidden_states.dtype),
        grid_spec=pltpu.PrefetchScalarGridSpec(
            num_scalar_prefetch=0,
            grid=grid,
            in_specs=[
                pl.BlockSpec((TB, TS, H), lambda b, s: (b, s, 0)),
                pl.BlockSpec((TB, TS, 1), lambda b, s: (b, s, 0)),
            ],
            out_specs=pl.BlockSpec((TB, H), lambda b, s: (b, 0)),
            scratch_shapes=[
                pltpu.VMEM((TB, H), jnp.float32),   # numerator accumulator
                pltpu.VMEM((TB, 1), jnp.float32),   # denominator accumulator
            ],
        ),
        compiler_params=pltpu.CompilerParams(
            dimension_semantics=("parallel", "arbitrary"),
            vmem_limit_bytes=_VMEM_LIMIT_BYTES,
        ),
        cost_estimate=cost,
    )(hidden_states, mask3)


def avg_reference(hidden_states, attention_mask):
    masked = hidden_states * attention_mask[..., None]
    return jnp.sum(masked, axis=1) / (
        jnp.sum(attention_mask, axis=1, keepdims=True) + EPS
    )


if __name__ == "__main__":
    key = jax.random.PRNGKey(0)
    k1, k2 = jax.random.split(key)

    # Small shapes consistent with the BERT AVG head: (batch, seq, hidden).
    B, S, H = 2, 32, 128
    hidden_states = jax.random.normal(k1, (B, S, H), dtype=jnp.float32)
    attention_mask = (jax.random.uniform(k2, (B, S)) > 0.3).astype(jnp.float32)

    ref = avg_reference(hidden_states, attention_mask)

    # 1) Auto-tiled path (single sequence step at these small shapes).
    out = jax.block_until_ready(avg_pallas(hidden_states, attention_mask))
    assert out.shape == (B, H)
    assert jnp.allclose(out, ref, atol=1e-5, rtol=1e-5), "mismatch (auto tiles)"

    # 2) Force sequence tiling to exercise the multi-step accumulator path
    #    (init at s==0, accumulate, finalize divide at s==last).
    out_tiled = jax.block_until_ready(
        avg_pallas(hidden_states, attention_mask, seq_tile=8)
    )
    assert jnp.allclose(out_tiled, ref, atol=1e-5, rtol=1e-5), "mismatch (tiled)"

    print("KERNEL_OK")
</pallas_src>

<mosaic_0001>
module attributes {stable_mosaic.version = 11 : i64} {
  func.func @_avg_kernel(%arg0: i32, %arg1: i32, %arg2: memref<2x32x128xf32, #tpu.memory_space<vmem>>, %arg3: memref<2x32x1xf32, #tpu.memory_space<vmem>>, %arg4: memref<2x128xf32, #tpu.memory_space<vmem>>, %arg5: memref<2x128xf32, #tpu.memory_space<vmem>>, %arg6: memref<2x1xf32, #tpu.memory_space<vmem>>) attributes {dimension_semantics = [#tpu.dimension_semantics<parallel>, #tpu.dimension_semantics<arbitrary>], iteration_bounds = array<i64: 1, 1>, scalar_prefetch = 0 : i64, scratch_operands = 2 : i64, tpu.core_type = #tpu.core_type<tc>, window_params = [{transform_indices = @transform_0, window_bounds = array<i64: 2, 32, 128>}, {transform_indices = @transform_1, window_bounds = array<i64: 2, 32, 1>}, {transform_indices = @transform_2, window_bounds = array<i64: 2, 128>}]} {
    %c0_i32 = arith.constant 0 : i32
    %0 = arith.cmpi eq, %arg1, %c0_i32 : i32
    %1 = arith.extui %0 : i1 to i32
    %c0_i32_0 = arith.constant 0 : i32
    %2 = arith.cmpi ne, %1, %c0_i32_0 : i32
    scf.if %2 {
      %cst_17 = arith.constant 0.000000e+00 : f32
      %18 = vector.broadcast %cst_17 : f32 to vector<2x128xf32>
      %c0_18 = arith.constant 0 : index
      %c0_19 = arith.constant 0 : index
      %19 = vector.load %arg5[%c0_18, %c0_19] : memref<2x128xf32, #tpu.memory_space<vmem>>, vector<2x128xf32>
      tpu.vector_store %arg5[%c0_18, %c0_19], %18 {strides = array<i32>} : memref<2x128xf32, #tpu.memory_space<vmem>>, vector<2x128xf32>,
      %cst_20 = arith.constant 0.000000e+00 : f32
      %20 = vector.broadcast %cst_20 : f32 to vector<2x1xf32>
      %c0_21 = arith.constant 0 : index
      %c0_22 = arith.constant 0 : index
      %21 = vector.load %arg6[%c0_21, %c0_22] : memref<2x1xf32, #tpu.memory_space<vmem>>, vector<2x1xf32>
      tpu.vector_store %arg6[%c0_21, %c0_22], %20 {strides = array<i32>} : memref<2x1xf32, #tpu.memory_space<vmem>>, vector<2x1xf32>,
    } else {
    }
    %c0 = arith.constant 0 : index
    %c0_1 = arith.constant 0 : index
    %c0_2 = arith.constant 0 : index
    %3 = vector.load %arg2[%c0, %c0_1, %c0_2] : memref<2x32x128xf32, #tpu.memory_space<vmem>>, vector<2x32x128xf32>
    %c0_3 = arith.constant 0 : index
    %c0_4 = arith.constant 0 : index
    %c0_5 = arith.constant 0 : index
    %4 = vector.load %arg3[%c0_3, %c0_4, %c0_5] : memref<2x32x1xf32, #tpu.memory_space<vmem>>, vector<2x32x1xf32>
    %c0_6 = arith.constant 0 : index
    %c0_7 = arith.constant 0 : index
    %5 = vector.load %arg5[%c0_6, %c0_7] : memref<2x128xf32, #tpu.memory_space<vmem>>, vector<2x128xf32>
    %6 = vector.broadcast %4 : vector<2x32x1xf32> to vector<2x32x128xf32>
    %7 = arith.mulf %3, %6 : vector<2x32x128xf32>
    %cst = arith.constant dense<0.000000e+00> : vector<2x128xf32>
    %8 = vector.multi_reduction <add>, %7, %cst [1] : vector<2x32x128xf32> to vector<2x128xf32>
    %9 = arith.addf %5, %8 : vector<2x128xf32>
    %c0_8 = arith.constant 0 : index
    %c0_9 = arith.constant 0 : index
    %10 = vector.load %arg5[%c0_8, %c0_9] : memref<2x128xf32, #tpu.memory_space<vmem>>, vector<2x128xf32>
    tpu.vector_store %arg5[%c0_8, %c0_9], %9 {strides = array<i32>} : memref<2x128xf32, #tpu.memory_space<vmem>>, vector<2x128xf32>,
    %c0_10 = arith.constant 0 : index
    %c0_11 = arith.constant 0 : index
    %11 = vector.load %arg6[%c0_10, %c0_11] : memref<2x1xf32, #tpu.memory_space<vmem>>, vector<2x1xf32>
    %cst_12 = arith.constant dense<0.000000e+00> : vector<2x1xf32>
    %12 = vector.multi_reduction <add>, %4, %cst_12 [1] : vector<2x32x1xf32> to vector<2x1xf32>
    %13 = arith.addf %11, %12 : vector<2x1xf32>
    %c0_13 = arith.constant 0 : index
    %c0_14 = arith.constant 0 : index
    %14 = vector.load %arg6[%c0_13, %c0_14] : memref<2x1xf32, #tpu.memory_space<vmem>>, vector<2x1xf32>
    tpu.vector_store %arg6[%c0_13, %c0_14], %13 {strides = array<i32>} : memref<2x1xf32, #tpu.memory_space<vmem>>, vector<2x1xf32>,
    %c0_i32_15 = arith.constant 0 : i32
    %15 = arith.cmpi eq, %arg1, %c0_i32_15 : i32
    %16 = arith.extui %15 : i1 to i32
    %c0_i32_16 = arith.constant 0 : i32
    %17 = arith.cmpi ne, %16, %c0_i32_16 : i32
    scf.if %17 {
      %c0_17 = arith.constant 0 : index
      %c0_18 = arith.constant 0 : index
      %18 = vector.load %arg5[%c0_17, %c0_18] : memref<2x128xf32, #tpu.memory_space<vmem>>, vector<2x128xf32>
      %c0_19 = arith.constant 0 : index
      %c0_20 = arith.constant 0 : index
      %19 = vector.load %arg6[%c0_19, %c0_20] : memref<2x1xf32, #tpu.memory_space<vmem>>, vector<2x1xf32>
      %cst_21 = arith.constant 9.99999996E-13 : f32
      %20 = vector.broadcast %cst_21 : f32 to vector<2x1xf32>
      %21 = arith.addf %19, %20 : vector<2x1xf32>
      %22 = vector.broadcast %21 : vector<2x1xf32> to vector<2x128xf32>
      %23 = arith.divf %18, %22 : vector<2x128xf32>
      %c0_22 = arith.constant 0 : index
      %c0_23 = arith.constant 0 : index
      %24 = vector.load %arg4[%c0_22, %c0_23] : memref<2x128xf32, #tpu.memory_space<vmem>>, vector<2x128xf32>
      tpu.vector_store %arg4[%c0_22, %c0_23], %23 {strides = array<i32>} : memref<2x128xf32, #tpu.memory_space<vmem>>, vector<2x128xf32>,
    } else {
    }
    return
  }
  func.func @transform_0(%arg0: i32, %arg1: i32) -> (i32, i32, i32) {
    %c0_i32 = arith.constant 0 : i32
    %c0_i32_0 = arith.constant 0 : i32
    return %arg0, %arg1, %c0_i32 : i32, i32, i32
  }
  func.func @transform_1(%arg0: i32, %arg1: i32) -> (i32, i32, i32) {
    %c0_i32 = arith.constant 0 : i32
    %c0_i32_0 = arith.constant 0 : i32
    return %arg0, %arg1, %c0_i32 : i32, i32, i32
  }
  func.func @transform_2(%arg0: i32, %arg1: i32) -> (i32, i32) {
    %c0_i32 = arith.constant 0 : i32
    %c0_i32_0 = arith.constant 0 : i32
    return %arg0, %c0_i32 : i32, i32
  }
}

</mosaic_0001>

<llo_original>
// kernel: tpu_custom_call.1
$region0: #{tpu_custom_call.1}
  #allocation0 [shape = 'u32[]', space=smem, size = 0x4, offset = 0x4, fixed_abs, tag = 'smem constant byte address 0x4 - core index']
  #allocation1 [shape = 'u32[144,128]{1,0:T(1,128)}', space=vmem, size = 0x12000, scoped, tag = 'internal scratch']
  #allocation2 [shape = 'f32[2,128]{1,0:T(2,128)}', space=vmem, size = 0x400, scoped, tag = 'scratch operand']
  #allocation3 [shape = 'f32[2,1]{1,0:T(2,128)}', space=vmem, size = 0x400, scoped, tag = 'scratch operand']
  %s0 = inlined_call_operand.vmem [shape: f32[2,32,128], index: 0, kind: input, shape index: {}]
  %s1 = inlined_call_operand.vmem [shape: f32[2,32,1], index: 1, kind: input, shape index: {}]
  %s2 = inlined_call_operand.hbm [shape: f32[2,128], index: 2, kind: output, shape index: {}]
  %s3 = sld [smem:[#allocation0]]
  $region26: #{tpu_custom_call.1} parent=0
    _
  %s5 = ssub.s32 1, %s3
  %s6 = scalar_select 0, %s5, %s3
  $region1: #{tpu_custom_call.1} parent=0
    #allocation4 [shape = 'u8[1024]{0}', space=vmem, size = 0x400, scoped, tag = 'output window, operand 0, single buffered']
    #allocation5 [shape = 's32[1]{0}', space=sflag, size = 0x4, scoped, tag = 'scoped memory for tpu_custom_call.1']
    %7 = vsyncpa [#allocation5], 0
    // Predicated region
    $region2: #{tpu_custom_call.1} parent=1 // pred_check
      _
    $region3: #{tpu_custom_call.1} parent=1 // pred_check_branch
      %9 = sbr.rel (0) target = $region5
    $region4: #{tpu_custom_call.1} parent=1 // pred_region
      _
    $region5: #{tpu_custom_call.1} parent=1 // pred_fallthru
      _
    // Predicated region
    $region6: #{tpu_custom_call.1} parent=1 // pred_check
      _
    $region7: #{tpu_custom_call.1} parent=1 // pred_check_branch
      %11 = sbr.rel (0) target = $region9
    $region8: #{tpu_custom_call.1} parent=1 // pred_region
      _
    $region9: #{tpu_custom_call.1} parent=1 // pred_fallthru
      _
    %p12 = scmp.eq.s32.totalorder 0, 0
    // Predicated region
    $region10: #{tpu_custom_call.1} parent=1 // pred_check
      %p13 = pneg %p12
    $region11: #{tpu_custom_call.1} parent=1 // pred_check_branch
      %15 = sbr.rel (%p13) target = $region13
    $region12: #{tpu_custom_call.1} parent=1 // pred_region
      %16 = vst [vmem:[#allocation2] sm:$0x3] 0.0
      %vm17 = vcmask 1024
      %18 = vst.msk [vmem:[#allocation3] sm:$0x3] %vm17, 0.0
    $region13: #{tpu_custom_call.1} parent=1 // pred_fallthru
      _
    %v19 = vld [vmem:[%s0] sm:$0xff]
    %v20 = vld [vmem:[%s0 + $0x8] sm:$0xff]
    %v21 = vld [vmem:[%s0 + $0x10] sm:$0xff]
    %v22 = vld [vmem:[%s0 + $0x18] sm:$0xff]
    %v23 = vld [vmem:[%s0 + $0x20] sm:$0xff]
    %v24 = vld [vmem:[%s0 + $0x28] sm:$0xff]
    %v25 = vld [vmem:[%s0 + $0x30] sm:$0xff]
    %v26 = vld [vmem:[%s0 + $0x38] sm:$0xff]
    %v27 = vld [vmem:[%s1] sm:$0xff]
    %v28 = vld [vmem:[%s1 + $0x8] sm:$0xff]
    %v29 = vld [vmem:[%s1 + $0x10] sm:$0xff]
    %v30 = vld [vmem:[%s1 + $0x18] sm:$0xff]
    %v31 = vld [vmem:[%s1 + $0x20] sm:$0xff]
    %v32 = vld [vmem:[%s1 + $0x28] sm:$0xff]
    %v33 = vld [vmem:[%s1 + $0x30] sm:$0xff]
    %v34 = vld [vmem:[%s1 + $0x38] sm:$0xff]
    %v35 = vld [vmem:[#allocation2] sm:$0x3]
    %37 = vset.pattern.permute.xlu0 0
    %38 = vperm.xlu0 %37, %v27
    %v39 = vpop.permute.xlu0 %38
    %42 = vset.pattern.permute.xlu0 0
    %43 = vperm.xlu0 %42, %v28
    %v44 = vpop.permute.xlu0 %43
    %47 = vset.pattern.permute.xlu0 0
    %48 = vperm.xlu0 %47, %v29
    %v49 = vpop.permute.xlu0 %48
    %52 = vset.pattern.permute.xlu0 0
    %53 = vperm.xlu0 %52, %v30
    %v54 = vpop.permute.xlu0 %53
    %57 = vset.pattern.permute.xlu0 0
    %58 = vperm.xlu0 %57, %v31
    %v59 = vpop.permute.xlu0 %58
    %62 = vset.pattern.permute.xlu0 0
    %63 = vperm.xlu0 %62, %v32
    %v64 = vpop.permute.xlu0 %63
    %67 = vset.pattern.permute.xlu0 0
    %68 = vperm.xlu0 %67, %v33
    %v69 = vpop.permute.xlu0 %68
    %72 = vset.pattern.permute.xlu0 0
    %73 = vperm.xlu0 %72, %v34
    %v74 = vpop.permute.xlu0 %73
    %v76 = vmul.f32 %v19, %v39
    %v77 = vmul.f32 %v20, %v44
    %v78 = vmul.f32 %v21, %v49
    %v79 = vmul.f32 %v22, %v54
    %v80 = vmul.f32 %v23, %v59
    %v81 = vmul.f32 %v24, %v64
    %v82 = vmul.f32 %v25, %v69
    %v83 = vmul.f32 %v26, %v74
    %v84 = vadd.f32 %v76, %v77
    %v85 = vadd.f32 %v84, %v78
    %v86 = vadd.f32 %v85, %v79
    %v87 = vrot.slane %v86, 4
    %v88 = vadd.f32 %v86, %v87
    %v89 = vrot.slane %v88, 2
    %v90 = vadd.f32 %v88, %v89
    %v91 = vrot.slane %v90, 1
    %v92 = vadd.f32 %v90, %v91
    %v93 = vadd.f32 %v80, %v81
    %v94 = vadd.f32 %v93, %v82
    %v95 = vadd.f32 %v94, %v83
    %v96 = vrot.slane %v95, 4
    %v97 = vadd.f32 %v95, %v96
    %v98 = vrot.slane %v97, 2
    %v99 = vadd.f32 %v97, %v98
    %v100 = vrot.slane %v99, 1
    %v101 = vadd.f32 %v99, %v100
    %vm104 = vcmask 1041409
    %v105 = vsel %vm104, %v101, %v92
    %v107 = vadd.f32 %v35, %v105
    %108 = vst [vmem:[#allocation2] sm:$0x3] %v107
    %v109 = vld [vmem:[#allocation3] sm:$0x3]
    %vm110 = vcmask 7168
    %v111 = vsel %vm110, %v27, 0.0
    %v112 = vsel %vm110, %v28, 0.0
    %v113 = vadd.f32 %v111, %v112
    %v114 = vsel %vm110, %v29, 0.0
    %v115 = vadd.f32 %v113, %v114
    %v116 = vsel %vm110, %v30, 0.0
    %v117 = vadd.f32 %v115, %v116
    %v118 = vrot.slane %v117, 4
    %v119 = vadd.f32 %v117, %v118
    %v120 = vrot.slane %v119, 2
    %v121 = vadd.f32 %v119, %v120
    %v122 = vrot.slane %v121, 1
    %v123 = vadd.f32 %v121, %v122
    %v124 = vsel %vm110, %v31, 0.0
    %v125 = vsel %vm110, %v32, 0.0
    %v126 = vadd.f32 %v124, %v125
    %v127 = vsel %vm110, %v33, 0.0
    %v128 = vadd.f32 %v126, %v127
    %v129 = vsel %vm110, %v34, 0.0
    %v130 = vadd.f32 %v128, %v129
    %v131 = vrot.slane %v130, 4
    %v132 = vadd.f32 %v130, %v131
    %v133 = vrot.slane %v132, 2
    %v134 = vadd.f32 %v132, %v133
    %v135 = vrot.slane %v134, 1
    %v136 = vadd.f32 %v134, %v135
    %v139 = vsel %vm104, %v136, %v123
    %v141 = vadd.f32 %v109, %v139
    %vm142 = vcmask 1024
    %143 = vst.msk [vmem:[#allocation3] sm:$0x3] %vm142, %v141
    // Predicated region
    $region14: #{tpu_custom_call.1} parent=1 // pred_check
      %p144 = pneg %p12
    $region15: #{tpu_custom_call.1} parent=1 // pred_check_branch
      %146 = sbr.rel (%p144) target = $region17
    $region16: #{tpu_custom_call.1} parent=1 // pred_region
      %v147 = vld [vmem:[#allocation2] sm:$0x3]
      %v148 = vld [vmem:[#allocation3] sm:$0x3]
      %v149 = vadd.f32 %v148, 1e-12
      %151 = vset.pattern.permute.xlu0 0
      %152 = vperm.xlu0 %151, %v149
      %v153 = vpop.permute.xlu0 %152
      %v155 = vrcp.pop %v153
      %v156 = vmul.f32 %v147, %v155
      %157 = vst [vmem:[#allocation4] sm:$0x3] %v156
    $region17: #{tpu_custom_call.1} parent=1 // pred_fallthru
      _
    // Predicated region
    $region18: #{tpu_custom_call.1} parent=1 // pred_check
      _
    $region19: #{tpu_custom_call.1} parent=1 // pred_check_branch
      %159 = sbr.rel (0) target = $region21
    $region20: #{tpu_custom_call.1} parent=1 // pred_region
      %s161 = ssub.s32 32, 32
      %162 = vsyncadd [#allocation5], %s161
      %s164 = sshll.u32 [#allocation4], 4
      %s165 = int_to_ptr.vmem [resolvable:$true] %s164
      %167 = dma.vmem_to_hbm [thread:$0]  %s165, 32, %s2, [#allocation5]
    $region21: #{tpu_custom_call.1} parent=1 // pred_fallthru
      _
    // Predicated region
    $region22: #{tpu_custom_call.1} parent=1 // pred_check
      _
    $region23: #{tpu_custom_call.1} parent=1 // pred_check_branch
      %169 = sbr.rel (0) target = $region25
    $region24: #{tpu_custom_call.1} parent=1 // pred_region
      %170 = dma.done [#allocation5], 32
    $region25: #{tpu_custom_call.1} parent=1 // pred_fallthru
      _
    %171 = vsyncpa [#allocation5], 1

</llo_original>
